<compile_context>
chip_gen: v5e
topology: v5e:2x2
jax: 0.10.0
libtpu: 0.0.40
codegen_flags: <defaults>
</compile_context>

<pallas_src>
import functools
import math

import numpy as np
import jax
import jax.numpy as jnp
from jax import lax
from jax.experimental import pallas as pl
from jax.experimental.pallas import tpu as pltpu


# ----------------------------------------------------------------------------
# helpers
# ----------------------------------------------------------------------------

def _round_up(x, m):
    return -(-x // m) * m


def _pick_tile(dim, candidates):
    for c in candidates:
        if dim % c == 0:
            return c
    return dim


# ----------------------------------------------------------------------------
# Pallas kernel: tiled matmul + fused bias  (bf16 inputs, f32 accumulate)
# ----------------------------------------------------------------------------

def _matmul_bias_kernel(a_ref, b_ref, bias_ref, o_ref, acc_ref):
    k = pl.program_id(2)

    @pl.when(k == 0)
    def _():
        acc_ref[...] = jnp.zeros_like(acc_ref)

    acc_ref[...] += jnp.dot(a_ref[...], b_ref[...],
                            preferred_element_type=jnp.float32)

    @pl.when(k == pl.num_programs(2) - 1)
    def _():
        o_ref[...] = acc_ref[...] + bias_ref[...]


def matmul_bias(a, w, b):
    """a: (M, K) float, w: (K, N) bf16 (stored), b: (N,) f32 -> (M, N) f32."""
    M, K = a.shape
    K2, N = w.shape
    assert K == K2, (K, K2)

    a = a.astype(jnp.bfloat16)
    w = w.astype(jnp.bfloat16)
    bias = b.astype(jnp.float32).reshape(1, N)

    # Tile selection.  K / N are left unpadded: if they are not 128-multiples
    # the full dimension is used as a single block (allowed by Pallas).
    tk = _pick_tile(K, (512, 256, 128)) if K % 128 == 0 else K
    tn = _pick_tile(N, (512, 256, 128)) if N % 128 == 0 else N
    Mp = _round_up(M, 8)
    if Mp <= 512:
        tm = Mp
    else:
        tm = 256
        Mp = _round_up(M, 256)
    if Mp != M:
        a = jnp.pad(a, ((0, Mp - M), (0, 0)))

    grid = (Mp // tm, N // tn, K // tk)
    out = pl.pallas_call(
        _matmul_bias_kernel,
        out_shape=jax.ShapeDtypeStruct((Mp, N), jnp.float32),
        grid_spec=pltpu.PrefetchScalarGridSpec(
            num_scalar_prefetch=0,
            grid=grid,
            in_specs=[
                pl.BlockSpec((tm, tk), lambda i, j, k: (i, k)),
                pl.BlockSpec((tk, tn), lambda i, j, k: (k, j)),
                pl.BlockSpec((1, tn), lambda i, j, k: (0, j)),
            ],
            out_specs=pl.BlockSpec((tm, tn), lambda i, j, k: (i, j)),
            scratch_shapes=[pltpu.VMEM((tm, tn), jnp.float32)],
        ),
        compiler_params=pltpu.CompilerParams(
            dimension_semantics=("parallel", "parallel", "arbitrary")),
    )(a, w, bias)
    return out[:M]


def linear(x, p):
    shp = x.shape
    y = matmul_bias(x.reshape(-1, shp[-1]), p["w"], p["b"])
    return y.reshape(shp[:-1] + (p["b"].shape[0],))


# ----------------------------------------------------------------------------
# Pallas kernel: direct 3x3 stride-1 conv (NHWC), taps folded in-kernel
# ----------------------------------------------------------------------------

def _make_conv3x3_kernel(cin, wo, tn):
    def kernel(x_ref, w_ref, b_ref, o_ref):
        # x_ref: (1, Hp, Wp, Cin) bf16 -- whole padded image, resident per n
        # w_ref: (9*Cin, tn) bf16, b_ref: (1, tn) f32, o_ref: (1, 1, Wo, tn) f32
        ho = pl.program_id(2)
        acc = jnp.zeros((wo, tn), jnp.float32)
        for kh in range(3):
            row = x_ref[0, ho + kh]                      # (Wp, Cin)
            for kw in range(3):
                xs = row[kw:kw + wo, :]                  # (Wo, Cin)
                ws = w_ref[pl.ds((kh * 3 + kw) * cin, cin), :]   # (Cin, tn)
                acc = acc + jnp.dot(xs, ws, preferred_element_type=jnp.float32)
        o_ref[0, 0] = acc + b_ref[...]
    return kernel


def conv3x3_s1(x, p):
    """3x3 stride-1 'same' conv.  x: (N, H, W, C) f32 -> (N, H, W, Cout) f32."""
    N, H, W, C = x.shape
    cout = p["b"].shape[0]
    krows = 9 * C
    xp = jnp.pad(x, ((0, 0), (1, 1), (1, 1), (0, 0))).astype(jnp.bfloat16)
    Hp, Wp = H + 2, W + 2
    bias = p["b"].astype(jnp.float32).reshape(1, cout)
    w = p["w"].astype(jnp.bfloat16)

    if cout % 128 == 0:
        tn = 256 if cout % 256 == 0 else 128
        if krows * tn * 2 * 2 > 12 * 1024 * 1024:   # keep weight double-buffer small
            tn = 128
    else:
        tn = cout

    grid = (N, cout // tn, H)
    return pl.pallas_call(
        _make_conv3x3_kernel(C, W, tn),
        out_shape=jax.ShapeDtypeStruct((N, H, W, cout), jnp.float32),
        grid_spec=pltpu.PrefetchScalarGridSpec(
            num_scalar_prefetch=0,
            grid=grid,
            in_specs=[
                pl.BlockSpec((1, Hp, Wp, C), lambda n, co, ho: (n, 0, 0, 0)),
                pl.BlockSpec((krows, tn), lambda n, co, ho: (0, co)),
                pl.BlockSpec((1, tn), lambda n, co, ho: (0, co)),
            ],
            out_specs=pl.BlockSpec((1, 1, W, tn), lambda n, co, ho: (n, ho, 0, co)),
        ),
        compiler_params=pltpu.CompilerParams(
            dimension_semantics=("parallel", "parallel", "parallel"),
            vmem_limit_bytes=32 * 1024 * 1024),
    )(xp, w, bias)


def conv3x3_s2(x, p):
    """3x3 stride-2 pad-1 conv (only the 3 downsample convs) via im2col+matmul."""
    N, H, W, C = x.shape
    xp = jnp.pad(x, ((0, 0), (1, 1), (1, 1), (0, 0)))
    Ho = (H + 2 - 3) // 2 + 1
    Wo = (W + 2 - 3) // 2 + 1
    cols = []
    for kh in range(3):
        for kw in range(3):
            cols.append(xp[:, kh:kh + 2 * Ho:2, kw:kw + 2 * Wo:2, :])
    patches = jnp.concatenate(cols, axis=-1).reshape(N * Ho * Wo, 9 * C)
    y = matmul_bias(patches, p["w"], p["b"])
    return y.reshape(N, Ho, Wo, -1)


def conv1x1(x, p):
    """1x1 conv == linear over channels (no transposes needed in NHWC)."""
    N, H, W, C = x.shape
    y = matmul_bias(x.reshape(N * H * W, C), p["w"], p["b"])
    return y.reshape(N, H, W, -1)


# ----------------------------------------------------------------------------
# Pallas kernel: fused GroupNorm (+ affine, + optional SiLU) in NHWC
# ----------------------------------------------------------------------------

def _make_group_norm_kernel(inv_count, eps, act_silu):
    def kernel(x_ref, m_ref, g_ref, b_ref, o_ref):
        x = x_ref[0]                                   # (HW, C) f32
        m = m_ref[...]                                 # (G, C) one-hot membership
        s1 = jnp.sum(x, axis=0, keepdims=True)         # (1, C)
        s2 = jnp.sum(x * x, axis=0, keepdims=True)     # (1, C)
        dn_cc = (((1,), (1,)), ((), ()))               # contract channel dims
        gs1 = lax.dot_general(s1, m, dn_cc, preferred_element_type=jnp.float32)
        gs2 = lax.dot_general(s2, m, dn_cc, preferred_element_type=jnp.float32)
        mean_g = gs1 * inv_count                       # (1, G)
        var_g = gs2 * inv_count - mean_g * mean_g
        inv_g = lax.rsqrt(var_g + eps)
        dn_gc = (((1,), (0,)), ((), ()))               # broadcast back to channels
        mean_c = lax.dot_general(mean_g, m, dn_gc, preferred_element_type=jnp.float32)
        inv_c = lax.dot_general(inv_g, m, dn_gc, preferred_element_type=jnp.float32)
        y = (x - mean_c) * inv_c * g_ref[...] + b_ref[...]
        if act_silu:
            y = y * (1.0 / (1.0 + jnp.exp(-y)))        # fused SiLU epilogue
        o_ref[0] = y
    return kernel


def group_norm(x, p, *, eps, silu=False):
    """x: (N, H, W, C) f32, 32 groups, contiguous channels per group."""
    N, H, W, C = x.shape
    G = 32
    cg = C // G
    HW = H * W
    xr = x.reshape(N, HW, C)
    member = jnp.asarray(np.repeat(np.eye(G, dtype=np.float32), cg, axis=1))
    gamma = p["w"].reshape(1, C)
    beta = p["b"].reshape(1, C)
    out = pl.pallas_call(
        _make_group_norm_kernel(1.0 / (HW * cg), eps, silu),
        out_shape=jax.ShapeDtypeStruct((N, HW, C), jnp.float32),
        grid=(N,),
        in_specs=[
            pl.BlockSpec((1, HW, C), lambda n: (n, 0, 0)),
            pl.BlockSpec((G, C), lambda n: (0, 0)),
            pl.BlockSpec((1, C), lambda n: (0, 0)),
            pl.BlockSpec((1, C), lambda n: (0, 0)),
        ],
        out_specs=pl.BlockSpec((1, HW, C), lambda n: (n, 0, 0)),
        compiler_params=pltpu.CompilerParams(
            dimension_semantics=("arbitrary",),
            vmem_limit_bytes=32 * 1024 * 1024),
    )(xr, member, gamma, beta)
    return out.reshape(N, H, W, C)


# ----------------------------------------------------------------------------
# Pallas kernel: fused LayerNorm (+ affine), row-tiled
# ----------------------------------------------------------------------------

def _make_layer_norm_kernel(eps):
    def kernel(x_ref, g_ref, b_ref, o_ref):
        x = x_ref[...]
        mean = jnp.mean(x, axis=-1, keepdims=True)
        var = jnp.mean(jnp.square(x - mean), axis=-1, keepdims=True)
        o_ref[...] = (x - mean) * lax.rsqrt(var + eps) * g_ref[...] + b_ref[...]
    return kernel


def layer_norm(x, p, eps=1e-5):
    shp = x.shape
    C = shp[-1]
    xr = x.reshape(-1, C)
    R = xr.shape[0]
    Rp = _round_up(R, 8)
    if Rp != R:
        xr = jnp.pad(xr, ((0, Rp - R), (0, 0)))
    tr = _pick_tile(Rp, (256, 128, 64, 32, 16, 8))
    out = pl.pallas_call(
        _make_layer_norm_kernel(eps),
        out_shape=jax.ShapeDtypeStruct((Rp, C), jnp.float32),
        grid=(Rp // tr,),
        in_specs=[
            pl.BlockSpec((tr, C), lambda i: (i, 0)),
            pl.BlockSpec((1, C), lambda i: (0, 0)),
            pl.BlockSpec((1, C), lambda i: (0, 0)),
        ],
        out_specs=pl.BlockSpec((tr, C), lambda i: (i, 0)),
        compiler_params=pltpu.CompilerParams(
            dimension_semantics=("parallel",)),
    )(xr, p["w"].reshape(1, C), p["b"].reshape(1, C))
    return out[:R].reshape(shp)


# ----------------------------------------------------------------------------
# Pallas kernel: fused per-head attention
# ----------------------------------------------------------------------------

def _attn_kernel(q_ref, k_ref, v_ref, o_ref):
    q = q_ref[0]            # (Sq, Dp) bf16, pre-scaled
    k = k_ref[0]            # (Skv, Dp) bf16
    v = v_ref[0]            # (Skv, Dp) bf16
    s = lax.dot_general(q, k, (((1,), (1,)), ((), ())),
                        preferred_element_type=jnp.float32)      # (Sq, Skv)
    m = jnp.max(s, axis=-1, keepdims=True)
    p = jnp.exp(s - m)
    denom = jnp.sum(p, axis=-1, keepdims=True)
    p = (p * pl.reciprocal(denom, approx=True)).astype(v.dtype)
    o_ref[0] = jnp.dot(p, v, preferred_element_type=jnp.float32)


def fused_attention(q, k, v, scale):
    """q: (BH, Sq, D), k/v: (BH, Skv, D) f32 -> (BH, Sq, D) f32."""
    # TODO(synk): add flash-style KV tiling (running max/sum) for production
    #             sequence lengths; the full score tile is fine at this scale.
    BH, Sq, D = q.shape
    _, Skv, _ = k.shape
    Dp = 128 if D < 128 else D          # lane-dense head dim (zero pad is a no-op)
    q = (q * scale).astype(jnp.bfloat16)
    k = k.astype(jnp.bfloat16)
    v = v.astype(jnp.bfloat16)
    if Dp != D:
        padw = ((0, 0), (0, 0), (0, Dp - D))
        q, k, v = jnp.pad(q, padw), jnp.pad(k, padw), jnp.pad(v, padw)
    out = pl.pallas_call(
        _attn_kernel,
        out_shape=jax.ShapeDtypeStruct((BH, Sq, Dp), jnp.float32),
        grid=(BH,),
        in_specs=[
            pl.BlockSpec((1, Sq, Dp), lambda h: (h, 0, 0)),
            pl.BlockSpec((1, Skv, Dp), lambda h: (h, 0, 0)),
            pl.BlockSpec((1, Skv, Dp), lambda h: (h, 0, 0)),
        ],
        out_specs=pl.BlockSpec((1, Sq, Dp), lambda h: (h, 0, 0)),
        compiler_params=pltpu.CompilerParams(
            dimension_semantics=("parallel",)),
    )(q, k, v)
    if Dp != D:
        out = out[..., :D]
    return out


def _split_heads(x, n_head):
    B, S, C = x.shape
    D = C // n_head
    return x.reshape(B, S, n_head, D).transpose(0, 2, 1, 3).reshape(B * n_head, S, D)


def _merge_heads(x, B, n_head):
    BH, S, D = x.shape
    return x.reshape(B, n_head, S, D).transpose(0, 2, 1, 3).reshape(B, S, n_head * D)


def mha_self(x, p, n_head):
    B, S, C = x.shape
    D = C // n_head
    qkv = matmul_bias(x.reshape(B * S, C), p["in_w"], p["in_b"])
    q = _split_heads(qkv[:, :C].reshape(B, S, C), n_head)
    k = _split_heads(qkv[:, C:2 * C].reshape(B, S, C), n_head)
    v = _split_heads(qkv[:, 2 * C:].reshape(B, S, C), n_head)
    o = _merge_heads(fused_attention(q, k, v, 1.0 / math.sqrt(D)), B, n_head)
    return matmul_bias(o.reshape(B * S, C), p["out_w"], p["out_b"]).reshape(B, S, C)


def mha_cross(x, ctx, p, n_head):
    B, S, C = x.shape
    _, Sk, Ck = ctx.shape
    D = C // n_head
    q = matmul_bias(x.reshape(B * S, C), p["q_w"], p["q_b"]).reshape(B, S, C)
    k = matmul_bias(ctx.reshape(B * Sk, Ck), p["k_w"], p["k_b"]).reshape(B, Sk, C)
    v = matmul_bias(ctx.reshape(B * Sk, Ck), p["v_w"], p["v_b"]).reshape(B, Sk, C)
    o = fused_attention(_split_heads(q, n_head), _split_heads(k, n_head),
                        _split_heads(v, n_head), 1.0 / math.sqrt(D))
    o = _merge_heads(o, B, n_head)
    return matmul_bias(o.reshape(B * S, C), p["out_w"], p["out_b"]).reshape(B, S, C)


# ----------------------------------------------------------------------------
# Network blocks (NHWC end-to-end)
# ----------------------------------------------------------------------------

@functools.partial(jax.jit, static_argnames=("n_head",))
def attention_block(x, context, p, *, n_head):
    residue_long = x
    h = group_norm(x, p["groupnorm"], eps=1e-6, silu=False)
    N, H, W, C = h.shape
    h = matmul_bias(h.reshape(N * H * W, C),
                    p["conv_input"]["w"], p["conv_input"]["b"]).reshape(N, H * W, C)

    res = h
    h = layer_norm(h, p["layernorm_1"])
    h = mha_self(h, p["attn1"], n_head)
    h = h + res

    res = h
    h = layer_norm(h, p["layernorm_2"])
    h = mha_cross(h, context, p["attn2"], n_head)
    h = h + res

    res = h
    h = layer_norm(h, p["layernorm_3"])
    g = linear(h, p["geglu1"])
    h1, gate = jnp.split(g, 2, axis=-1)
    h = h1 * jax.nn.gelu(gate, approximate=False)
    h = linear(h, p["geglu2"])
    h = h + res

    h = matmul_bias(h.reshape(N * H * W, C),
                    p["conv_output"]["w"], p["conv_output"]["b"]).reshape(N, H, W, C)
    return h + residue_long


@jax.jit
def residual_block(feature, time, p):
    residue = feature
    h = group_norm(feature, p["gn_feature"], eps=1e-5, silu=True)   # fused SiLU
    h = conv3x3_s1(h, p["conv_feature"])

    t = jax.nn.silu(time)
    t = matmul_bias(t, p["time_w"], p["time_b"])                    # (1, cout)
    merged = h + t[:, None, None, :]

    merged = group_norm(merged, p["gn_merged"], eps=1e-5, silu=True)
    merged = conv3x3_s1(merged, p["conv_merged"])

    if p["residual"] is None:
        res = residue
    else:
        res = conv1x1(residue, p["residual"])
    return merged + res


@jax.jit
def upsample(x, p):
    x = jnp.repeat(jnp.repeat(x, 2, axis=1), 2, axis=2)   # nearest, scale 2 (NHWC)
    return conv3x3_s1(x, p["conv"])


@functools.partial(jax.jit, static_argnames=("k", "stride"))
def plain_conv(x, p, *, k, stride):
    if k == 1:
        return conv1x1(x, p)
    if stride == 1:
        return conv3x3_s1(x, p)
    return conv3x3_s2(x, p)


# ----------------------------------------------------------------------------
# Deterministic parameter initialization (synthetic weights, stored bf16)
# ----------------------------------------------------------------------------

_rng = np.random.default_rng(0)


def _w(*shape):
    return (_rng.random(shape, dtype=np.float32) - 0.5) * 0.08


def init_conv(cin, cout, k):
    # NOTE: weight rows are flattened in (kh, kw, Cin) order; real PyTorch
    # (Cout, Cin, kh, kw) weights would need permuting before flattening.
    return {"w": jnp.asarray(_w(k * k * cin, cout), jnp.bfloat16),
            "b": jnp.asarray(_w(cout), jnp.float32)}


def init_linear(cin, cout):
    return {"w": jnp.asarray(_w(cin, cout), jnp.bfloat16),
            "b": jnp.asarray(_w(cout), jnp.float32)}


def init_norm(c):
    return {"w": jnp.ones((c,), jnp.float32), "b": jnp.zeros((c,), jnp.float32)}


def init_resblock(cin, cout, n_time=1280):
    return {
        "gn_feature": init_norm(cin),
        "conv_feature": init_conv(cin, cout, 3),
        "time_w": jnp.asarray(_w(n_time, cout), jnp.bfloat16),
        "time_b": jnp.asarray(_w(cout), jnp.float32),
        "gn_merged": init_norm(cout),
        "conv_merged": init_conv(cout, cout, 3),
        "residual": None if cin == cout else init_conv(cin, cout, 1),
    }


def init_attnblock(n_head, n_embd, n_ctx=768):
    C = n_head * n_embd
    return {
        "groupnorm": init_norm(C),
        "conv_input": init_conv(C, C, 1),
        "layernorm_1": init_norm(C),
        "attn1": {"in_w": jnp.asarray(_w(C, 3 * C), jnp.bfloat16),
                  "in_b": jnp.zeros((3 * C,), jnp.float32),          # bias=False
                  "out_w": jnp.asarray(_w(C, C), jnp.bfloat16),
                  "out_b": jnp.asarray(_w(C), jnp.float32)},
        "layernorm_2": init_norm(C),
        "attn2": {"q_w": jnp.asarray(_w(C, C), jnp.bfloat16),
                  "q_b": jnp.zeros((C,), jnp.float32),
                  "k_w": jnp.asarray(_w(n_ctx, C), jnp.bfloat16),
                  "k_b": jnp.zeros((C,), jnp.float32),
                  "v_w": jnp.asarray(_w(n_ctx, C), jnp.bfloat16),
                  "v_b": jnp.zeros((C,), jnp.float32),
                  "out_w": jnp.asarray(_w(C, C), jnp.bfloat16),
                  "out_b": jnp.asarray(_w(C), jnp.float32)},
        "layernorm_3": init_norm(C),
        "geglu1": init_linear(C, 8 * C),
        "geglu2": init_linear(4 * C, C),
        "conv_output": init_conv(C, C, 1),
    }


def init_unet():
    def conv_layer(cin, cout, k, stride):
        return {"type": "conv", "p": init_conv(cin, cout, k), "k": k, "stride": stride}

    def res_layer(cin, cout):
        return {"type": "res", "p": init_resblock(cin, cout)}

    def attn_layer(n_head, n_embd):
        return {"type": "attn", "p": init_attnblock(n_head, n_embd), "n_head": n_head}

    def up_layer(c):
        return {"type": "upsample", "p": {"conv": init_conv(c, c, 3)}}

    encoders = [
        [conv_layer(4, 320, 3, 1)],
        [res_layer(320, 320), attn_layer(8, 40)],
        [res_layer(320, 320), attn_layer(8, 40)],
        [conv_layer(320, 320, 3, 2)],
        [res_layer(320, 640), attn_layer(8, 80)],
        [res_layer(640, 640), attn_layer(8, 80)],
        [conv_layer(640, 640, 3, 2)],
        [res_layer(640, 1280), attn_layer(8, 160)],
        [res_layer(1280, 1280), attn_layer(8, 160)],
        [conv_layer(1280, 1280, 3, 2)],
        [res_layer(1280, 1280)],
        [res_layer(1280, 1280)],
    ]
    bottleneck = [res_layer(1280, 1280), attn_layer(8, 160), res_layer(1280, 1280)]
    decoders = [
        [res_layer(2560, 1280)],
        [res_layer(2560, 1280)],
        [res_layer(2560, 1280), up_layer(1280)],
        [res_layer(2560, 1280), attn_layer(8, 160)],
        [res_layer(2560, 1280), attn_layer(8, 160)],
        [res_layer(1920, 1280), attn_layer(8, 160), up_layer(1280)],
        [res_layer(1920, 640), attn_layer(8, 80)],
        [res_layer(1280, 640), attn_layer(8, 80)],
        [res_layer(960, 640), attn_layer(8, 80), up_layer(640)],
        [res_layer(960, 320), attn_layer(8, 40)],
        [res_layer(640, 320), attn_layer(8, 40)],
        [res_layer(640, 320), attn_layer(8, 40)],
    ]
    return {"encoders": encoders, "bottleneck": bottleneck, "decoders": decoders}


# ----------------------------------------------------------------------------
# UNet forward
# ----------------------------------------------------------------------------

def apply_sequential(layers, x, context, time):
    for layer in layers:
        t = layer["type"]
        if t == "conv":
            x = plain_conv(x, layer["p"], k=layer["k"], stride=layer["stride"])
        elif t == "res":
            x = residual_block(x, time, layer["p"])
        elif t == "attn":
            x = attention_block(x, context, layer["p"], n_head=layer["n_head"])
        elif t == "upsample":
            x = upsample(x, layer["p"])
        else:
            raise ValueError(t)
    return x


def unet_forward(params, x, context, time):
    # TODO(synk): the per-block jits fuse all elementwise glue; a whole-model
    #             jit would additionally remove per-layer dispatch overhead.
    h = jnp.transpose(x, (0, 2, 3, 1))                 # NCHW -> NHWC (once)
    skips = []
    for layers in params["encoders"]:
        h = apply_sequential(layers, h, context, time)
        skips.append(h)
    h = apply_sequential(params["bottleneck"], h, context, time)
    for layers in params["decoders"]:
        h = jnp.concatenate([h, skips.pop()], axis=-1)  # channel concat (x, skip)
        h = apply_sequential(layers, h, context, time)
    return jnp.transpose(h, (0, 3, 1, 2))              # NHWC -> NCHW (once)


# ----------------------------------------------------------------------------
# Main
# ----------------------------------------------------------------------------

if __name__ == "__main__":
    key = jax.random.PRNGKey(0)
    kx, kc, kt = jax.random.split(key, 3)

    B, H, W = 1, 16, 16                       # spatial must be divisible by 8
    seq_ctx = 8

    x = jax.random.normal(kx, (B, 4, H, W), dtype=jnp.float32)
    context = jax.random.normal(kc, (B, seq_ctx, 768), dtype=jnp.float32)
    time = jax.random.normal(kt, (1, 1280), dtype=jnp.float32)

    params = init_unet()

    out = unet_forward(params, x, context, time)
    out = jax.block_until_ready(out)

    assert out.shape == (B, 320, H, W), out.shape
    assert bool(jnp.all(jnp.isfinite(out)))
    print("KERNEL_OK")
</pallas_src>

<mosaic_0001>
module attributes {stable_mosaic.version = 11 : i64} {
  func.func @kernel(%arg0: i32, %arg1: i32, %arg2: i32, %arg3: memref<1x18x18x4xbf16, #tpu.memory_space<vmem>>, %arg4: memref<36x320xbf16, #tpu.memory_space<vmem>>, %arg5: memref<1x320xf32, #tpu.memory_space<vmem>>, %arg6: memref<1x1x16x320xf32, #tpu.memory_space<vmem>>) attributes {dimension_semantics = [#tpu.dimension_semantics<parallel>, #tpu.dimension_semantics<parallel>, #tpu.dimension_semantics<parallel>], iteration_bounds = array<i64: 1, 1, 16>, scalar_prefetch = 0 : i64, scratch_operands = 0 : i64, tpu.core_type = #tpu.core_type<tc>, window_params = [{transform_indices = @transform_0, window_bounds = array<i64: 1, 18, 18, 4>}, {transform_indices = @transform_1, window_bounds = array<i64: 36, 320>}, {transform_indices = @transform_2, window_bounds = array<i64: 1, 320>}, {transform_indices = @transform_3, window_bounds = array<i64: 1, 1, 16, 320>}]} {
    %cst = arith.constant 0.000000e+00 : f32
    %0 = vector.broadcast %cst : f32 to vector<16x320xf32>
    %c0_i32 = arith.constant 0 : i32
    %1 = arith.addi %arg2, %c0_i32 : i32
    %c0 = arith.constant 0 : index
    %2 = arith.index_cast %1 : i32 to index
    %c0_0 = arith.constant 0 : index
    %c0_1 = arith.constant 0 : index
    %3 = vector.load %arg3[%c0, %2, %c0_0, %c0_1] : memref<1x18x18x4xbf16, #tpu.memory_space<vmem>>, vector<1x1x18x4xbf16>
    %4 = vector.shape_cast %3 : vector<1x1x18x4xbf16> to vector<18x4xbf16>
    %5 = vector.extract_strided_slice %4 {offsets = [0, 0], sizes = [16, 4], strides = [1, 1]} : vector<18x4xbf16> to vector<16x4xbf16>
    %c0_2 = arith.constant 0 : index
    %c0_3 = arith.constant 0 : index
    %6 = vector.load %arg4[%c0_2, %c0_3] : memref<36x320xbf16, #tpu.memory_space<vmem>>, vector<4x320xbf16>
    %cst_4 = arith.constant dense<0.000000e+00> : vector<16x320xf32>
    %7 = tpu.matmul %5, %6, %cst_4 {dimension_numbers = #tpu.dot_dimension_numbers<[1], [0], [0], [1], [0, 0, 1, 1], [], []>} : vector<16x4xbf16>, vector<4x320xbf16>, vector<16x320xf32> -> vector<16x320xf32>
    %8 = arith.addf %0, %7 : vector<16x320xf32>
    %9 = vector.extract_strided_slice %4 {offsets = [1, 0], sizes = [16, 4], strides = [1, 1]} : vector<18x4xbf16> to vector<16x4xbf16>
    %c4 = arith.constant 4 : index
    %c0_5 = arith.constant 0 : index
    %10 = vector.load %arg4[%c4, %c0_5] : memref<36x320xbf16, #tpu.memory_space<vmem>>, vector<4x320xbf16>
    %cst_6 = arith.constant dense<0.000000e+00> : vector<16x320xf32>
    %11 = tpu.matmul %9, %10, %cst_6 {dimension_numbers = #tpu.dot_dimension_numbers<[1], [0], [0], [1], [0, 0, 1, 1], [], []>} : vector<16x4xbf16>, vector<4x320xbf16>, vector<16x320xf32> -> vector<16x320xf32>
    %12 = arith.addf %8, %11 : vector<16x320xf32>
    %13 = vector.extract_strided_slice %4 {offsets = [2, 0], sizes = [16, 4], strides = [1, 1]} : vector<18x4xbf16> to vector<16x4xbf16>
    %c8 = arith.constant 8 : index
    %c0_7 = arith.constant 0 : index
    %14 = vector.load %arg4[%c8, %c0_7] : memref<36x320xbf16, #tpu.memory_space<vmem>>, vector<4x320xbf16>
    %cst_8 = arith.constant dense<0.000000e+00> : vector<16x320xf32>
    %15 = tpu.matmul %13, %14, %cst_8 {dimension_numbers = #tpu.dot_dimension_numbers<[1], [0], [0], [1], [0, 0, 1, 1], [], []>} : vector<16x4xbf16>, vector<4x320xbf16>, vector<16x320xf32> -> vector<16x320xf32>
    %16 = arith.addf %12, %15 : vector<16x320xf32>
    %c1_i32 = arith.constant 1 : i32
    %17 = arith.addi %arg2, %c1_i32 : i32
    %c0_9 = arith.constant 0 : index
    %18 = arith.index_cast %17 : i32 to index
    %c0_10 = arith.constant 0 : index
    %c0_11 = arith.constant 0 : index
    %19 = vector.load %arg3[%c0_9, %18, %c0_10, %c0_11] : memref<1x18x18x4xbf16, #tpu.memory_space<vmem>>, vector<1x1x18x4xbf16>
    %20 = vector.shape_cast %19 : vector<1x1x18x4xbf16> to vector<18x4xbf16>
    %21 = vector.extract_strided_slice %20 {offsets = [0, 0], sizes = [16, 4], strides = [1, 1]} : vector<18x4xbf16> to vector<16x4xbf16>
    %c12 = arith.constant 12 : index
    %c0_12 = arith.constant 0 : index
    %22 = vector.load %arg4[%c12, %c0_12] : memref<36x320xbf16, #tpu.memory_space<vmem>>, vector<4x320xbf16>
    %cst_13 = arith.constant dense<0.000000e+00> : vector<16x320xf32>
    %23 = tpu.matmul %21, %22, %cst_13 {dimension_numbers = #tpu.dot_dimension_numbers<[1], [0], [0], [1], [0, 0, 1, 1], [], []>} : vector<16x4xbf16>, vector<4x320xbf16>, vector<16x320xf32> -> vector<16x320xf32>
    %24 = arith.addf %16, %23 : vector<16x320xf32>
    %25 = vector.extract_strided_slice %20 {offsets = [1, 0], sizes = [16, 4], strides = [1, 1]} : vector<18x4xbf16> to vector<16x4xbf16>
    %c16 = arith.constant 16 : index
    %c0_14 = arith.constant 0 : index
    %26 = vector.load %arg4[%c16, %c0_14] : memref<36x320xbf16, #tpu.memory_space<vmem>>, vector<4x320xbf16>
    %cst_15 = arith.constant dense<0.000000e+00> : vector<16x320xf32>
    %27 = tpu.matmul %25, %26, %cst_15 {dimension_numbers = #tpu.dot_dimension_numbers<[1], [0], [0], [1], [0, 0, 1, 1], [], []>} : vector<16x4xbf16>, vector<4x320xbf16>, vector<16x320xf32> -> vector<16x320xf32>
    %28 = arith.addf %24, %27 : vector<16x320xf32>
    %29 = vector.extract_strided_slice %20 {offsets = [2, 0], sizes = [16, 4], strides = [1, 1]} : vector<18x4xbf16> to vector<16x4xbf16>
    %c20 = arith.constant 20 : index
    %c0_16 = arith.constant 0 : index
    %30 = vector.load %arg4[%c20, %c0_16] : memref<36x320xbf16, #tpu.memory_space<vmem>>, vector<4x320xbf16>
    %cst_17 = arith.constant dense<0.000000e+00> : vector<16x320xf32>
    %31 = tpu.matmul %29, %30, %cst_17 {dimension_numbers = #tpu.dot_dimension_numbers<[1], [0], [0], [1], [0, 0, 1, 1], [], []>} : vector<16x4xbf16>, vector<4x320xbf16>, vector<16x320xf32> -> vector<16x320xf32>
    %32 = arith.addf %28, %31 : vector<16x320xf32>
    %c2_i32 = arith.constant 2 : i32
    %33 = arith.addi %arg2, %c2_i32 : i32
    %c0_18 = arith.constant 0 : index
    %34 = arith.index_cast %33 : i32 to index
    %c0_19 = arith.constant 0 : index
    %c0_20 = arith.constant 0 : index
    %35 = vector.load %arg3[%c0_18, %34, %c0_19, %c0_20] : memref<1x18x18x4xbf16, #tpu.memory_space<vmem>>, vector<1x1x18x4xbf16>
    %36 = vector.shape_cast %35 : vector<1x1x18x4xbf16> to vector<18x4xbf16>
    %37 = vector.extract_strided_slice %36 {offsets = [0, 0], sizes = [16, 4], strides = [1, 1]} : vector<18x4xbf16> to vector<16x4xbf16>
    %c24 = arith.constant 24 : index
    %c0_21 = arith.constant 0 : index
    %38 = vector.load %arg4[%c24, %c0_21] : memref<36x320xbf16, #tpu.memory_space<vmem>>, vector<4x320xbf16>
    %cst_22 = arith.constant dense<0.000000e+00> : vector<16x320xf32>
    %39 = tpu.matmul %37, %38, %cst_22 {dimension_numbers = #tpu.dot_dimension_numbers<[1], [0], [0], [1], [0, 0, 1, 1], [], []>} : vector<16x4xbf16>, vector<4x320xbf16>, vector<16x320xf32> -> vector<16x320xf32>
    %40 = arith.addf %32, %39 : vector<16x320xf32>
    %41 = vector.extract_strided_slice %36 {offsets = [1, 0], sizes = [16, 4], strides = [1, 1]} : vector<18x4xbf16> to vector<16x4xbf16>
    %c28 = arith.constant 28 : index
    %c0_23 = arith.constant 0 : index
    %42 = vector.load %arg4[%c28, %c0_23] : memref<36x320xbf16, #tpu.memory_space<vmem>>, vector<4x320xbf16>
    %cst_24 = arith.constant dense<0.000000e+00> : vector<16x320xf32>
    %43 = tpu.matmul %41, %42, %cst_24 {dimension_numbers = #tpu.dot_dimension_numbers<[1], [0], [0], [1], [0, 0, 1, 1], [], []>} : vector<16x4xbf16>, vector<4x320xbf16>, vector<16x320xf32> -> vector<16x320xf32>
    %44 = arith.addf %40, %43 : vector<16x320xf32>
    %45 = vector.extract_strided_slice %36 {offsets = [2, 0], sizes = [16, 4], strides = [1, 1]} : vector<18x4xbf16> to vector<16x4xbf16>
    %c32 = arith.constant 32 : index
    %c0_25 = arith.constant 0 : index
    %46 = vector.load %arg4[%c32, %c0_25] : memref<36x320xbf16, #tpu.memory_space<vmem>>, vector<4x320xbf16>
    %cst_26 = arith.constant dense<0.000000e+00> : vector<16x320xf32>
    %47 = tpu.matmul %45, %46, %cst_26 {dimension_numbers = #tpu.dot_dimension_numbers<[1], [0], [0], [1], [0, 0, 1, 1], [], []>} : vector<16x4xbf16>, vector<4x320xbf16>, vector<16x320xf32> -> vector<16x320xf32>
    %48 = arith.addf %44, %47 : vector<16x320xf32>
    %c0_27 = arith.constant 0 : index
    %c0_28 = arith.constant 0 : index
    %49 = vector.load %arg5[%c0_27, %c0_28] : memref<1x320xf32, #tpu.memory_space<vmem>>, vector<1x320xf32>
    %50 = vector.broadcast %49 : vector<1x320xf32> to vector<16x320xf32>
    %51 = arith.addf %48, %50 : vector<16x320xf32>
    %c0_29 = arith.constant 0 : index
    %c0_30 = arith.constant 0 : index
    %c0_31 = arith.constant 0 : index
    %c0_32 = arith.constant 0 : index
    %52 = vector.load %arg6[%c0_29, %c0_30, %c0_31, %c0_32] : memref<1x1x16x320xf32, #tpu.memory_space<vmem>>, vector<1x1x16x320xf32>
    %53 = vector.shape_cast %52 : vector<1x1x16x320xf32> to vector<16x320xf32>
    %54 = vector.shape_cast %51 : vector<16x320xf32> to vector<1x1x16x320xf32>
    tpu.vector_store %arg6[%c0_29, %c0_30, %c0_31, %c0_32], %54 {strides = array<i32>} : memref<1x1x16x320xf32, #tpu.memory_space<vmem>>, vector<1x1x16x320xf32>,
    return
  }
  func.func @transform_0(%arg0: i32, %arg1: i32, %arg2: i32) -> (i32, i32, i32, i32) {
    %c0_i32 = arith.constant 0 : i32
    %c0_i32_0 = arith.constant 0 : i32
    %c0_i32_1 = arith.constant 0 : i32
    %c0_i32_2 = arith.constant 0 : i32
    return %arg0, %c0_i32, %c0_i32_0, %c0_i32_1 : i32, i32, i32, i32
  }
  func.func @transform_1(%arg0: i32, %arg1: i32, %arg2: i32) -> (i32, i32) {
    %c0_i32 = arith.constant 0 : i32
    %c0_i32_0 = arith.constant 0 : i32
    return %c0_i32, %arg1 : i32, i32
  }
  func.func @transform_2(%arg0: i32, %arg1: i32, %arg2: i32) -> (i32, i32) {
    %c0_i32 = arith.constant 0 : i32
    %c0_i32_0 = arith.constant 0 : i32
    return %c0_i32, %arg1 : i32, i32
  }
  func.func @transform_3(%arg0: i32, %arg1: i32, %arg2: i32) -> (i32, i32, i32, i32) {
    %c0_i32 = arith.constant 0 : i32
    %c0_i32_0 = arith.constant 0 : i32
    return %arg0, %arg2, %c0_i32, %arg1 : i32, i32, i32, i32
  }
}

</mosaic_0001>

<llo_original>
// kernel: plain_conv.1
$region0: #{plain_conv.1}
  #allocation0 [shape = 'u32[]', space=smem, size = 0x4, offset = 0x4, fixed_abs, tag = 'smem constant byte address 0x4 - core index']
  #allocation1 [shape = 'u32[72,128]{1,0:T(1,128)}', space=vmem, size = 0x9000, scoped, tag = 'internal scratch']
  %s0 = inlined_call_operand.vmem [shape: bf16[1,18,18,4], index: 0, kind: input, shape index: {}]
  %s1 = inlined_call_operand.vmem [shape: bf16[36,320], index: 1, kind: input, shape index: {}]
  %s2 = inlined_call_operand.vmem [shape: f32[1,320], index: 2, kind: input, shape index: {}]
  %s3 = inlined_call_operand.hbm [shape: f32[1,16,16,320], index: 3, kind: output, shape index: {}]
  %s4 = sld [smem:[#allocation0]]
  $region45: #{plain_conv.1} parent=0
    _
  %s6 = ssub.s32 1, %s4
  %s7 = scalar_select 0, %s6, %s4
  $region1: #{plain_conv.1} parent=0
    #allocation2 [shape = 'u8[49152]{0}', space=vmem, size = 0xc000, scoped, tag = 'output window, operand 0']
    #allocation3 [shape = 's32[2]{0}', space=sflag, size = 0x8, scoped, tag = 'scoped memory for plain_conv.1']
    %8 = vsyncpa [#allocation3], 0
    %s9 = scalar_lea.sflag [#allocation3], 1
    %10 = vsyncpa %s9, 0
    loop: start=0, step=1, limit=18
    $region2: #{plain_conv.1} parent=1 // loop_pre_header
      _
    $region3: #{plain_conv.1} parent=1 // loop_header
      %s12 = sphi 0, %s16
      %p13 = scmp.ge.s32.totalorder %s12, 18
      %s19 = sphi 0, %s38
      %s20 = sphi 0, %s34
      %s21 = sphi 0, %s30
      %s22 = sphi 0, %s19
      %s23 = sphi 0, %s20
      %s24 = sphi 0, %s21
      %s25 = sphi 0, %s22
      %s26 = sphi 0, %s23
      %s27 = sphi 0, %s24
      %s41 = sphi 0, %s43
      %s44 = sphi 0, %s41
      %s45 = sphi 0, %s44
      %s61 = sphi 0, %s45
      %s67 = sphi 0, %s69
      %s70 = sphi 0, %s67
      %s71 = sphi 0, %s70
      %s87 = sphi 0, %s71
      %s93 = sphi 0, %s95
      %s96 = sphi 0, %s93
      %s97 = sphi 0, %s96
      %s113 = sphi 0, %s97
      %s123 = sphi 0, %s125
      %s126 = sphi 0, %s123
      %s127 = sphi 0, %s126
      %s143 = sphi 0, %s127
    $region4: #{plain_conv.1} parent=1 // loop_header_branch
      %15 = sbr.rel (%p13) target = $region8
    $region5: #{plain_conv.1} parent=1 // loop_body
      %s17 = ssub.s32 %s12, 1
      %s18 = ssub.s32 %s12, 2
      %s28 = sadd.s32 1, %s21
      %p29 = scmp.ge.s32.totalorder %s28, 16
      %s30 = scalar_select %p29, 0, %s28
      %s31 = sadd.s32 1, %s20
      %s32 = scalar_select %p29, %s31, %s20
      %p33 = scmp.ge.s32.totalorder %s32, 1
      %s34 = scalar_select %p33, 0, %s32
      %s35 = sadd.s32 1, %s19
      %s36 = scalar_select %p33, %s35, %s19
      %p37 = scmp.ge.s32.totalorder %s36, 1
      %s38 = scalar_select %p37, 0, %s36
      %s39 = ssub.s32 %s19, %s38
      %p40 = scmp.eq.s32.totalorder %s39, 0
      %s42 = sadd.s32 %s41, 1
      %s43 = scalar_select %p40, %s41, %s42
      %p46 = pneg %p40
      %p47 = scmp.eq.s32.totalorder %s12, 15
      %p48 = por %p46, %p47
      %p49 = scmp.ne.s32.totalorder %s41, %s44
      %p50 = scmp.eq.s32.totalorder %s12, 0
      %p51 = por %p49, %p50
      %p52 = scmp.ne.s32.totalorder %s41, %s44
      %p53 = scmp.eq.s32.totalorder %s17, 15
      %p54 = por %p52, %p53
      %p55 = scmp.ne.s32.totalorder %s44, %s45
      %p56 = scmp.eq.s32.totalorder %s17, 0
      %p57 = por %p55, %p56
      %p58 = scmp.ne.s32.totalorder %s44, %s45
      %p59 = scmp.eq.s32.totalorder %s18, 15
      %p60 = por %p58, %p59
      %p62 = scmp.ne.s32.totalorder %s45, %s61
      %p63 = scmp.eq.s32.totalorder %s18, 0
      %p64 = por %p62, %p63
      %s65 = ssub.s32 %s20, %s34
      %p66 = scmp.eq.s32.totalorder %s65, 0
      %s68 = sadd.s32 %s67, 1
      %s69 = scalar_select %p66, %s67, %s68
      %p72 = pneg %p66
      %p73 = scmp.eq.s32.totalorder %s12, 15
      %p74 = por %p72, %p73
      %p75 = scmp.ne.s32.totalorder %s67, %s70
      %p76 = scmp.eq.s32.totalorder %s12, 0
      %p77 = por %p75, %p76
      %p78 = scmp.ne.s32.totalorder %s67, %s70
      %p79 = scmp.eq.s32.totalorder %s17, 15
      %p80 = por %p78, %p79
      %p81 = scmp.ne.s32.totalorder %s70, %s71
      %p82 = scmp.eq.s32.totalorder %s17, 0
      %p83 = por %p81, %p82
      %p84 = scmp.ne.s32.totalorder %s70, %s71
      %p85 = scmp.eq.s32.totalorder %s18, 15
      %p86 = por %p84, %p85
      %p88 = scmp.ne.s32.totalorder %s71, %s87
      %p89 = scmp.eq.s32.totalorder %s18, 0
      %p90 = por %p88, %p89
      %s91 = ssub.s32 %s20, %s34
      %p92 = scmp.eq.s32.totalorder %s91, 0
      %s94 = sadd.s32 %s93, 1
      %s95 = scalar_select %p92, %s93, %s94
      %p98 = pneg %p92
      %p99 = scmp.eq.s32.totalorder %s12, 15
      %p100 = por %p98, %p99
      %p101 = scmp.ne.s32.totalorder %s93, %s96
      %p102 = scmp.eq.s32.totalorder %s12, 0
      %p103 = por %p101, %p102
      %p104 = scmp.ne.s32.totalorder %s93, %s96
      %p105 = scmp.eq.s32.totalorder %s17, 15
      %p106 = por %p104, %p105
      %p107 = scmp.ne.s32.totalorder %s96, %s97
      %p108 = scmp.eq.s32.totalorder %s17, 0
      %p109 = por %p107, %p108
      %p110 = scmp.ne.s32.totalorder %s96, %s97
      %p111 = scmp.eq.s32.totalorder %s18, 15
      %p112 = por %p110, %p111
      %p114 = scmp.ne.s32.totalorder %s97, %s113
      %p115 = scmp.eq.s32.totalorder %s18, 0
      %p116 = por %p114, %p115
      %s117 = ssub.s32 %s19, %s38
      %s118 = ssub.s32 %s21, %s30
      %s119 = sor.u32 %s117, %s118
      %s120 = ssub.s32 %s20, %s34
      %s121 = sor.u32 %s119, %s120
      %p122 = scmp.eq.s32.totalorder %s121, 0
      %s124 = sadd.s32 %s123, 1
      %s125 = scalar_select %p122, %s123, %s124
      %p128 = pneg %p122
      %p129 = scmp.eq.s32.totalorder %s12, 15
      %p130 = por %p128, %p129
      %p131 = scmp.ne.s32.totalorder %s123, %s126
      %p132 = scmp.eq.s32.totalorder %s12, 0
      %p133 = por %p131, %p132
      %p134 = scmp.ne.s32.totalorder %s123, %s126
      %p135 = scmp.eq.s32.totalorder %s17, 15
      %p136 = por %p134, %p135
      %p137 = scmp.ne.s32.totalorder %s126, %s127
      %p138 = scmp.eq.s32.totalorder %s17, 0
      %p139 = por %p137, %p138
      %p140 = scmp.ne.s32.totalorder %s126, %s127
      %p141 = scmp.eq.s32.totalorder %s18, 15
      %p142 = por %p140, %p141
      %p144 = scmp.ne.s32.totalorder %s127, %s143
      %p145 = scmp.eq.s32.totalorder %s18, 0
      %p146 = por %p144, %p145
      %p147 = scmp.le.s32.totalorder 1, %s12
      %p148 = scmp.lt.s32.totalorder %s12, 17
      %p149 = pnand %p147, %p148
      %p150 = pneg %p149
      // Predicated region
      $region9: #{plain_conv.1} parent=5 // pred_check
        _
      $region10: #{plain_conv.1} parent=5 // pred_check_branch
        %152 = sbr.rel (%p149) target = $region12
      $region11: #{plain_conv.1} parent=5 // pred_region
        %s153 = ssub.s32 %s12, 1
        // Predicated region
        $region13: #{plain_conv.1} parent=11 // pred_check
          %p154 = pneg %p57
        $region14: #{plain_conv.1} parent=11 // pred_check_branch
          %156 = sbr.rel (%p154) target = $region16
        $region15: #{plain_conv.1} parent=11 // pred_region
          %p157 = scmp.lt.s32.totalorder %s22, 0
          %s158 = scalar_select %p157, %s22, 0
          %s159 = smul.addr %s158, 54
          %s160 = smul.addr %s159, 4
          %s161 = scalar_lea.vmem %s0, %s160
        $region16: #{plain_conv.1} parent=11 // pred_fallthru
          _
        // Predicated region
        $region17: #{plain_conv.1} parent=11 // pred_check
          %p162 = pneg %p83
        $region18: #{plain_conv.1} parent=11 // pred_check_branch
          %164 = sbr.rel (%p162) target = $region20
        $region19: #{plain_conv.1} parent=11 // pred_region
          %s165 = smul.u32 3, %s23
          %p166 = scmp.lt.s32.totalorder %s165, 2
          %s167 = scalar_select %p166, %s165, 2
          %s168 = smul.addr %s167, 4
          %s169 = scalar_lea.vmem %s1, %s168
          %s170 = smul.u32 3, %s23
        $region20: #{plain_conv.1} parent=11 // pred_fallthru
          _
        // Predicated region
        $region21: #{plain_conv.1} parent=11 // pred_check
          %p171 = pneg %p109
        $region22: #{plain_conv.1} parent=11 // pred_check_branch
          %173 = sbr.rel (%p171) target = $region24
        $region23: #{plain_conv.1} parent=11 // pred_region
          %s174 = smul.u32 3, %s23
          %p175 = scmp.lt.s32.totalorder %s174, 2
          %s176 = scalar_select %p175, %s174, 2
          %s177 = scalar_lea.vmem %s2, %s176
          %s178 = smul.u32 3, %s23
        $region24: #{plain_conv.1} parent=11 // pred_fallthru
          _
      $region12: #{plain_conv.1} parent=5 // pred_fallthru
        _
      %p179 = scmp.lt.s32.totalorder %s12, 16
      // Predicated region
      $region25: #{plain_conv.1} parent=5 // pred_check
        %p180 = pneg %p179
      $region26: #{plain_conv.1} parent=5 // pred_check_branch
        %182 = sbr.rel (%p180) target = $region28
      $region27: #{plain_conv.1} parent=5 // pred_region
        _
      $region28: #{plain_conv.1} parent=5 // pred_fallthru
        _
      %p183 = scmp.le.s32.totalorder 1, %s12
      %p184 = scmp.lt.s32.totalorder %s12, 17
      %p185 = pnand %p183, %p184
      %p186 = pneg %p185
      // Predicated region
      $region29: #{plain_conv.1} parent=5 // pred_check
        _
      $region30: #{plain_conv.1} parent=5 // pred_check_branch
        %188 = sbr.rel (%p185) target = $region32
      $region31: #{plain_conv.1} parent=5 // pred_region
        %s189 = ssub.s32 %s12, 1
        %p190 = scmp.lt.s32.totalorder %s22, 0
        %s191 = scalar_select %p190, %s22, 0
        %s192 = smul.addr %s191, 54
        %s193 = smul.addr %s192, 4
        %s194 = scalar_lea.vmem %s0, %s193
        %p195 = pneg %p57
        %p196 = pneg %p54
        %s197 = smul.u32 3, %s23
        %p198 = scmp.lt.s32.totalorder %s197, 2
        %s199 = scalar_select %p198, %s197, 2
        %s200 = smul.addr %s199, 4
        %s201 = scalar_lea.vmem %s1, %s200
        %p202 = pneg %p83
        %p203 = pneg %p80
        %s204 = smul.u32 3, %s23
        %p205 = scmp.lt.s32.totalorder %s204, 2
        %s206 = scalar_select %p205, %s204, 2
        %s207 = scalar_lea.vmem %s2, %s206
        %p208 = pneg %p109
        %p209 = pneg %p106
        %p210 = pneg %p139
        %p211 = pneg %p136
        %s212 = sand.u32 %s126, 1
        %s213 = scalar_lea.sflag [#allocation3], %s212
        %s214 = sand.u32 %s126, 1
        %s215 = smul.addr %s214, 48
        %s216 = scalar_lea.vmem [#allocation2], %s215
        %p217 = scmp.lt.s32.totalorder %s22, 0
        %s218 = scalar_select %p217, %s22, 0
        %s219 = smul.addr %s218, 54
        %s220 = smul.addr %s219, 4
        %s221 = scalar_lea.vmem %s0, %s220
        %s222 = smul.u32 3, %s23
        %p223 = scmp.lt.s32.totalorder %s222, 2
        %s224 = scalar_select %p223, %s222, 2
        %s225 = smul.addr %s224, 4
        %s226 = scalar_lea.vmem %s1, %s225
        %s227 = smul.u32 3, %s23
        %s228 = smul.u32 3, %s23
        %p229 = scmp.lt.s32.totalorder %s228, 2
        %s230 = scalar_select %p229, %s228, 2
        %s231 = scalar_lea.vmem %s2, %s230
        %s232 = smul.u32 3, %s23
        %s233 = smul.u32 3, %s23
        %s235 = smul.u32 %s24, 3
        %s236 = smul.addr %s235, 4
        %s237 = scalar_lea.vmem %s221, %s236
        %v238 = vld [vmem:[%s237] sm:$0xf]
        %v239 = vld [vmem:[%s237 + $0x4] sm:$0xf]
        %v240 = vld [vmem:[%s237 + $0x8] sm:$0x1]
        %v241 = vld [vmem:[%s226] sm:$0x33]
        %v242 = vld [vmem:[%s226 + $0x8] sm:$0x3]
        %v243 = vld [vmem:[%s226] sm:$0xcc]
        %v244 = vld [vmem:[%s226 + $0x8] sm:$0xc]
        %v248 = vunpack.c.l.b16 %v238
        %v249 = vunpack.c.l.b16 %v239
        %v250 = vunpack.c.l.b16 %v240
        %v251 = vpack.c.b16 %v249, %v248
        %v252 = vpack.c.b16 %v250, %v250
        %vm253 = vsmask.f32 7424
        %v255 = vshrl.u32 %v251, 16
        %v257 = vshll.u32 %v251, 16
        %v259 = vrot.slane %v257, 1
        %v260 = vor.u32 %v255, %v259
        %v262 = vshll.u32 %v252, 16
        %v264 = vrot.slane %v262, 1
        %v265 = vsel %vm253, %v260, %v264
        %v268 = vunpack.c.l.b16 %v243
        %v269 = vunpack.c.h.b16 %v243
        %v270 = vunpack.c.l.b16 %v244
        %v271 = vpack.c.b16 %v268, %v268
        %v272 = vpack.c.b16 %v269, %v269
        %v273 = vpack.c.b16 %v270, %v270
        %v274 = vrot.slane %v271, 2
        %v275 = vrot.slane %v272, 2
        %v276 = vrot.slane %v273, 2
        %vm277 = vcmask 31744
        %v279 = vsel %vm277, %v265, 0
        %vm281 = vcmask 1041408
        %v283 = vsel %vm281, %v274, 0
        %v286 = vsel %vm281, %v275, 0
        %v289 = vsel %vm281, %v276, 0
        %291 = vmatpush.bf16.msra.mxu0 0
        %292 = vmatpush.bf16.msra.mxu0 0
        %293 = vmatpush.bf16.msra.mxu0 0
        %294 = vmatpush.bf16.msra.mxu0 0
        %295 = vmatpush.bf16.msra.mxu0 0
        %296 = vmatpush.bf16.msra.mxu0 0
        %297 = vmatpush.bf16.msra.mxu0 0
        %298 = vmatpush.bf16.msra.mxu0 %v283
        %299 = vmatmul.bf16.gmra.mxu0 %v279
        %v300 = vpop.f32.mrf.mxu0
        %v301 = vadd.f32 0.0, %v300
        %v302 = vpop.f32.mrf.mxu0
        %v303 = vadd.f32 0.0, %v302
        %304 = vdwg.mxu0
        %305 = vmatpush.bf16.msra.mxu0 0
        %306 = vmatpush.bf16.msra.mxu0 0
        %307 = vmatpush.bf16.msra.mxu0 0
        %308 = vmatpush.bf16.msra.mxu0 0
        %309 = vmatpush.bf16.msra.mxu0 0
        %310 = vmatpush.bf16.msra.mxu0 0
        %311 = vmatpush.bf16.msra.mxu0 0
        %312 = vmatpush.bf16.msra.mxu0 %v286
        %313 = vmatmul.bf16.gmra.mxu0 %v279
        %v314 = vpop.f32.mrf.mxu0
        %v315 = vadd.f32 0.0, %v314
        %v316 = vpop.f32.mrf.mxu0
        %v317 = vadd.f32 0.0, %v316
        %318 = vdwg.mxu0
        %319 = vmatpush.bf16.msra.mxu0 0
        %320 = vmatpush.bf16.msra.mxu0 0
        %321 = vmatpush.bf16.msra.mxu0 0
        %322 = vmatpush.bf16.msra.mxu0 0
        %323 = vmatpush.bf16.msra.mxu0 0
        %324 = vmatpush.bf16.msra.mxu0 0
        %325 = vmatpush.bf16.msra.mxu0 0
        %326 = vmatpush.bf16.msra.mxu0 %v289
        %327 = vmatmul.bf16.gmra.mxu0 %v279
        %v328 = vpop.f32.mrf.mxu0
        %v329 = vadd.f32 0.0, %v328
        %v330 = vpop.f32.mrf.mxu0
        %v331 = vadd.f32 0.0, %v330
        %332 = vdwg.mxu0
        %v335 = vunpack.c.l.b16 %v241
        %v336 = vunpack.c.h.b16 %v241
        %v337 = vunpack.c.l.b16 %v242
        %v338 = vpack.c.b16 %v335, %v335
        %v339 = vpack.c.b16 %v336, %v336
        %v340 = vpack.c.b16 %v337, %v337
        %v341 = vsel %vm277, %v251, 0
        %v344 = vsel %vm281, %v338, 0
        %v347 = vsel %vm281, %v339, 0
        %v350 = vsel %vm281, %v340, 0
        %352 = vmatpush.bf16.msra.mxu0 0
        %353 = vmatpush.bf16.msra.mxu0 0
        %354 = vmatpush.bf16.msra.mxu0 0
        %355 = vmatpush.bf16.msra.mxu0 0
        %356 = vmatpush.bf16.msra.mxu0 0
        %357 = vmatpush.bf16.msra.mxu0 0
        %358 = vmatpush.bf16.msra.mxu0 0
        %359 = vmatpush.bf16.msra.mxu0 %v344
        %360 = vmatmul.bf16.gmra.mxu0 %v341
        %v361 = vpop.f32.mrf.mxu0
        %v362 = vadd.f32 %v301, %v361
        %v363 = vpop.f32.mrf.mxu0
        %v364 = vadd.f32 %v303, %v363
        %365 = vdwg.mxu0
        %366 = vmatpush.bf16.msra.mxu0 0
        %367 = vmatpush.bf16.msra.mxu0 0
        %368 = vmatpush.bf16.msra.mxu0 0
        %369 = vmatpush.bf16.msra.mxu0 0
        %370 = vmatpush.bf16.msra.mxu0 0
        %371 = vmatpush.bf16.msra.mxu0 0
        %372 = vmatpush.bf16.msra.mxu0 0
        %373 = vmatpush.bf16.msra.mxu0 %v347
        %374 = vmatmul.bf16.gmra.mxu0 %v341
        %v375 = vpop.f32.mrf.mxu0
        %v376 = vadd.f32 %v315, %v375
        %v377 = vpop.f32.mrf.mxu0
        %v378 = vadd.f32 %v317, %v377
        %379 = vdwg.mxu0
        %380 = vmatpush.bf16.msra.mxu0 0
        %381 = vmatpush.bf16.msra.mxu0 0
        %382 = vmatpush.bf16.msra.mxu0 0
        %383 = vmatpush.bf16.msra.mxu0 0
        %384 = vmatpush.bf16.msra.mxu0 0
        %385 = vmatpush.bf16.msra.mxu0 0
        %386 = vmatpush.bf16.msra.mxu0 0
        %387 = vmatpush.bf16.msra.mxu0 %v350
        %388 = vmatmul.bf16.gmra.mxu0 %v341
        %v389 = vpop.f32.mrf.mxu0
        %v390 = vadd.f32 %v329, %v389
        %v391 = vpop.f32.mrf.mxu0
        %v392 = vadd.f32 %v331, %v391
        %393 = vdwg.mxu0
        %v394 = vld [vmem:[%s226 + $0xc] sm:$0x33]
        %v395 = vld [vmem:[%s226 + $0x14] sm:$0x3]
        %vm396 = vcmask 1046528
        %v397 = vrot.slane %v251, 1
        %v398 = vrot.slane %v252, 1
        %v399 = vsel %vm396, %v397, %v398
        %v402 = vunpack.c.l.b16 %v394
        %v403 = vunpack.c.h.b16 %v394
        %v404 = vunpack.c.l.b16 %v395
        %v405 = vpack.c.b16 %v402, %v402
        %v406 = vpack.c.b16 %v403, %v403
        %v407 = vpack.c.b16 %v404, %v404
        %v409 = vsel %vm277, %v399, 0
        %v412 = vsel %vm281, %v405, 0
        %v415 = vsel %vm281, %v406, 0
        %v418 = vsel %vm281, %v407, 0
        %420 = vmatpush.bf16.msra.mxu0 0
        %421 = vmatpush.bf16.msra.mxu0 0
        %422 = vmatpush.bf16.msra.mxu0 0
        %423 = vmatpush.bf16.msra.mxu0 0
        %424 = vmatpush.bf16.msra.mxu0 0
        %425 = vmatpush.bf16.msra.mxu0 0
        %426 = vmatpush.bf16.msra.mxu0 0
        %427 = vmatpush.bf16.msra.mxu0 %v412
        %428 = vmatmul.bf16.gmra.mxu0 %v409
        %v429 = vpop.f32.mrf.mxu0
        %v430 = vadd.f32 0.0, %v429
        %v431 = vpop.f32.mrf.mxu0
        %v432 = vadd.f32 0.0, %v431
        %433 = vdwg.mxu0
        %434 = vmatpush.bf16.msra.mxu0 0
        %435 = vmatpush.bf16.msra.mxu0 0
        %436 = vmatpush.bf16.msra.mxu0 0
        %437 = vmatpush.bf16.msra.mxu0 0
        %438 = vmatpush.bf16.msra.mxu0 0
        %439 = vmatpush.bf16.msra.mxu0 0
        %440 = vmatpush.bf16.msra.mxu0 0
        %441 = vmatpush.bf16.msra.mxu0 %v415
        %442 = vmatmul.bf16.gmra.mxu0 %v409
        %v443 = vpop.f32.mrf.mxu0
        %v444 = vadd.f32 0.0, %v443
        %v445 = vpop.f32.mrf.mxu0
        %v446 = vadd.f32 0.0, %v445
        %447 = vdwg.mxu0
        %448 = vmatpush.bf16.msra.mxu0 0
        %449 = vmatpush.bf16.msra.mxu0 0
        %450 = vmatpush.bf16.msra.mxu0 0
        %451 = vmatpush.bf16.msra.mxu0 0
        %452 = vmatpush.bf16.msra.mxu0 0
        %453 = vmatpush.bf16.msra.mxu0 0
        %454 = vmatpush.bf16.msra.mxu0 0
        %455 = vmatpush.bf16.msra.mxu0 %v418
        %456 = vmatmul.bf16.gmra.mxu0 %v409
        %v457 = vpop.f32.mrf.mxu0
        %v458 = vadd.f32 0.0, %v457
        %v459 = vpop.f32.mrf.mxu0
        %v460 = vadd.f32 0.0, %v459
        %461 = vdwg.mxu0
        %v462 = vadd.f32 %v362, %v430
        %v463 = vadd.f32 %v376, %v444
        %v464 = vadd.f32 %v390, %v458
        %v465 = vadd.f32 %v364, %v432
        %v466 = vadd.f32 %v378, %v446
        %v467 = vadd.f32 %v392, %v460
        %s468 = sadd.s32 %s24, 1
        %s469 = smul.u32 %s468, 3
        %s470 = smul.addr %s469, 4
        %s471 = scalar_lea.vmem %s221, %s470
        %v472 = vld [vmem:[%s471] sm:$0xf]
        %v473 = vld [vmem:[%s471 + $0x4] sm:$0xf]
        %v474 = vld [vmem:[%s471 + $0x8] sm:$0x1]
        %v475 = vld [vmem:[%s226 + $0xc] sm:$0xcc]
        %v476 = vld [vmem:[%s226 + $0x14] sm:$0xc]
        %v479 = vunpack.c.l.b16 %v472
        %v480 = vunpack.c.l.b16 %v473
        %v481 = vpack.c.b16 %v480, %v479
        %v484 = vunpack.c.l.b16 %v475
        %v485 = vunpack.c.h.b16 %v475
        %v486 = vunpack.c.l.b16 %v476
        %v487 = vpack.c.b16 %v484, %v484
        %v488 = vpack.c.b16 %v485, %v485
        %v489 = vpack.c.b16 %v486, %v486
        %v490 = vrot.slane %v487, 2
        %v491 = vrot.slane %v488, 2
        %v492 = vrot.slane %v489, 2
        %v494 = vsel %vm277, %v481, 0
        %v497 = vsel %vm281, %v490, 0
        %v500 = vsel %vm281, %v491, 0
        %v503 = vsel %vm281, %v492, 0
        %505 = vmatpush.bf16.msra.mxu0 0
        %506 = vmatpush.bf16.msra.mxu0 0
        %507 = vmatpush.bf16.msra.mxu0 0
        %508 = vmatpush.bf16.msra.mxu0 0
        %509 = vmatpush.bf16.msra.mxu0 0
        %510 = vmatpush.bf16.msra.mxu0 0
        %511 = vmatpush.bf16.msra.mxu0 0
        %512 = vmatpush.bf16.msra.mxu0 %v497
        %513 = vmatmul.bf16.gmra.mxu0 %v494
        %v514 = vpop.f32.mrf.mxu0
        %v515 = vadd.f32 0.0, %v514
        %v516 = vpop.f32.mrf.mxu0
        %v517 = vadd.f32 0.0, %v516
        %518 = vdwg.mxu0
        %519 = vmatpush.bf16.msra.mxu0 0
        %520 = vmatpush.bf16.msra.mxu0 0
        %521 = vmatpush.bf16.msra.mxu0 0
        %522 = vmatpush.bf16.msra.mxu0 0
        %523 = vmatpush.bf16.msra.mxu0 0
        %524 = vmatpush.bf16.msra.mxu0 0
        %525 = vmatpush.bf16.msra.mxu0 0
        %526 = vmatpush.bf16.msra.mxu0 %v500
        %527 = vmatmul.bf16.gmra.mxu0 %v494
        %v528 = vpop.f32.mrf.mxu0
        %v529 = vadd.f32 0.0, %v528
        %v530 = vpop.f32.mrf.mxu0
        %v531 = vadd.f32 0.0, %v530
        %532 = vdwg.mxu0
        %533 = vmatpush.bf16.msra.mxu0 0
        %534 = vmatpush.bf16.msra.mxu0 0
        %535 = vmatpush.bf16.msra.mxu0 0
        %536 = vmatpush.bf16.msra.mxu0 0
        %537 = vmatpush.bf16.msra.mxu0 0
        %538 = vmatpush.bf16.msra.mxu0 0
        %539 = vmatpush.bf16.msra.mxu0 0
        %540 = vmatpush.bf16.msra.mxu0 %v503
        %541 = vmatmul.bf16.gmra.mxu0 %v494
        %v542 = vpop.f32.mrf.mxu0
        %v543 = vadd.f32 0.0, %v542
        %v544 = vpop.f32.mrf.mxu0
        %v545 = vadd.f32 0.0, %v544
        %546 = vdwg.mxu0
        %v547 = vadd.f32 %v462, %v515
        %v548 = vadd.f32 %v463, %v529
        %v549 = vadd.f32 %v464, %v543
        %v550 = vadd.f32 %v465, %v517
        %v551 = vadd.f32 %v466, %v531
        %v552 = vadd.f32 %v467, %v545
        %v553 = vld [vmem:[%s226 + $0x18] sm:$0x33]
        %v554 = vld [vmem:[%s226 + $0x20] sm:$0x3]
        %v556 = vunpack.c.l.b16 %v474
        %v557 = vpack.c.b16 %v556, %v556
        %v558 = vshrl.u32 %v481, 16
        %v560 = vshll.u32 %v481, 16
        %v562 = vrot.slane %v560, 1
        %v563 = vor.u32 %v558, %v562
        %v565 = vshll.u32 %v557, 16
        %v567 = vrot.slane %v565, 1
        %v568 = vsel %vm253, %v563, %v567
        %v571 = vunpack.c.l.b16 %v553
        %v572 = vunpack.c.h.b16 %v553
        %v573 = vunpack.c.l.b16 %v554
        %v574 = vpack.c.b16 %v571, %v571
        %v575 = vpack.c.b16 %v572, %v572
        %v576 = vpack.c.b16 %v573, %v573
        %v578 = vsel %vm277, %v568, 0
        %v581 = vsel %vm281, %v574, 0
        %v584 = vsel %vm281, %v575, 0
        %v587 = vsel %vm281, %v576, 0
        %589 = vmatpush.bf16.msra.mxu0 0
        %590 = vmatpush.bf16.msra.mxu0 0
        %591 = vmatpush.bf16.msra.mxu0 0
        %592 = vmatpush.bf16.msra.mxu0 0
        %593 = vmatpush.bf16.msra.mxu0 0
        %594 = vmatpush.bf16.msra.mxu0 0
        %595 = vmatpush.bf16.msra.mxu0 0
        %596 = vmatpush.bf16.msra.mxu0 %v581
        %597 = vmatmul.bf16.gmra.mxu0 %v578
        %v598 = vpop.f32.mrf.mxu0
        %v599 = vadd.f32 0.0, %v598
        %v600 = vpop.f32.mrf.mxu0
        %v601 = vadd.f32 0.0, %v600
        %602 = vdwg.mxu0
        %603 = vmatpush.bf16.msra.mxu0 0
        %604 = vmatpush.bf16.msra.mxu0 0
        %605 = vmatpush.bf16.msra.mxu0 0
        %606 = vmatpush.bf16.msra.mxu0 0
        %607 = vmatpush.bf16.msra.mxu0 0
        %608 = vmatpush.bf16.msra.mxu0 0
        %609 = vmatpush.bf16.msra.mxu0 0
        %610 = vmatpush.bf16.msra.mxu0 %v584
        %611 = vmatmul.bf16.gmra.mxu0 %v578
        %v612 = vpop.f32.mrf.mxu0
        %v613 = vadd.f32 0.0, %v612
        %v614 = vpop.f32.mrf.mxu0
        %v615 = vadd.f32 0.0, %v614
        %616 = vdwg.mxu0
        %617 = vmatpush.bf16.msra.mxu0 0
        %618 = vmatpush.bf16.msra.mxu0 0
        %619 = vmatpush.bf16.msra.mxu0 0
        %620 = vmatpush.bf16.msra.mxu0 0
        %621 = vmatpush.bf16.msra.mxu0 0
        %622 = vmatpush.bf16.msra.mxu0 0
        %623 = vmatpush.bf16.msra.mxu0 0
        %624 = vmatpush.bf16.msra.mxu0 %v587
        %625 = vmatmul.bf16.gmra.mxu0 %v578
        %v626 = vpop.f32.mrf.mxu0
        %v627 = vadd.f32 0.0, %v626
        %v628 = vpop.f32.mrf.mxu0
        %v629 = vadd.f32 0.0, %v628
        %630 = vdwg.mxu0
        %v631 = vadd.f32 %v547, %v599
        %v632 = vadd.f32 %v548, %v613
        %v633 = vadd.f32 %v549, %v627
        %v634 = vadd.f32 %v550, %v601
        %v635 = vadd.f32 %v551, %v615
        %v636 = vadd.f32 %v552, %v629
        %v637 = vld [vmem:[%s226 + $0x18] sm:$0xcc]
        %v638 = vld [vmem:[%s226 + $0x20] sm:$0xc]
        %v639 = vrot.slane %v481, 1
        %v640 = vrot.slane %v557, 1
        %v641 = vsel %vm396, %v639, %v640
        %v644 = vunpack.c.l.b16 %v637
        %v645 = vunpack.c.h.b16 %v637
        %v646 = vunpack.c.l.b16 %v638
        %v647 = vpack.c.b16 %v644, %v644
        %v648 = vpack.c.b16 %v645, %v645
        %v649 = vpack.c.b16 %v646, %v646
        %v650 = vrot.slane %v647, 2
        %v651 = vrot.slane %v648, 2
        %v652 = vrot.slane %v649, 2
        %v654 = vsel %vm277, %v641, 0
        %v657 = vsel %vm281, %v650, 0
        %v660 = vsel %vm281, %v651, 0
        %v663 = vsel %vm281, %v652, 0
        %665 = vmatpush.bf16.msra.mxu0 0
        %666 = vmatpush.bf16.msra.mxu0 0
        %667 = vmatpush.bf16.msra.mxu0 0
        %668 = vmatpush.bf16.msra.mxu0 0
        %669 = vmatpush.bf16.msra.mxu0 0
        %670 = vmatpush.bf16.msra.mxu0 0
        %671 = vmatpush.bf16.msra.mxu0 0
        %672 = vmatpush.bf16.msra.mxu0 %v657
        %673 = vmatmul.bf16.gmra.mxu0 %v654
        %v674 = vpop.f32.mrf.mxu0
        %v675 = vadd.f32 0.0, %v674
        %v676 = vpop.f32.mrf.mxu0
        %v677 = vadd.f32 0.0, %v676
        %678 = vdwg.mxu0
        %679 = vmatpush.bf16.msra.mxu0 0
        %680 = vmatpush.bf16.msra.mxu0 0
        %681 = vmatpush.bf16.msra.mxu0 0
        %682 = vmatpush.bf16.msra.mxu0 0
        %683 = vmatpush.bf16.msra.mxu0 0
        %684 = vmatpush.bf16.msra.mxu0 0
        %685 = vmatpush.bf16.msra.mxu0 0
        %686 = vmatpush.bf16.msra.mxu0 %v660
        %687 = vmatmul.bf16.gmra.mxu0 %v654
        %v688 = vpop.f32.mrf.mxu0
        %v689 = vadd.f32 0.0, %v688
        %v690 = vpop.f32.mrf.mxu0
        %v691 = vadd.f32 0.0, %v690
        %692 = vdwg.mxu0
        %693 = vmatpush.bf16.msra.mxu0 0
        %694 = vmatpush.bf16.msra.mxu0 0
        %695 = vmatpush.bf16.msra.mxu0 0
        %696 = vmatpush.bf16.msra.mxu0 0
        %697 = vmatpush.bf16.msra.mxu0 0
        %698 = vmatpush.bf16.msra.mxu0 0
        %699 = vmatpush.bf16.msra.mxu0 0
        %700 = vmatpush.bf16.msra.mxu0 %v663
        %701 = vmatmul.bf16.gmra.mxu0 %v654
        %v702 = vpop.f32.mrf.mxu0
        %v703 = vadd.f32 0.0, %v702
        %v704 = vpop.f32.mrf.mxu0
        %v705 = vadd.f32 0.0, %v704
        %706 = vdwg.mxu0
        %v707 = vadd.f32 %v631, %v675
        %v708 = vadd.f32 %v632, %v689
        %v709 = vadd.f32 %v633, %v703
        %v710 = vadd.f32 %v634, %v677
        %v711 = vadd.f32 %v635, %v691
        %v712 = vadd.f32 %v636, %v705
        %s713 = sadd.s32 %s24, 2
        %s714 = smul.u32 %s713, 3
        %s715 = smul.addr %s714, 4
        %s716 = scalar_lea.vmem %s221, %s715
        %v717 = vld [vmem:[%s716] sm:$0xf]
        %v718 = vld [vmem:[%s716 + $0x4] sm:$0xf]
        %v719 = vld [vmem:[%s716 + $0x8] sm:$0x1]
        %v720 = vld [vmem:[%s226 + $0x24] sm:$0x33]
        %v721 = vld [vmem:[%s226 + $0x2c] sm:$0x3]
        %v724 = vunpack.c.l.b16 %v717
        %v725 = vunpack.c.l.b16 %v718
        %v726 = vpack.c.b16 %v725, %v724
        %v729 = vunpack.c.l.b16 %v720
        %v730 = vunpack.c.h.b16 %v720
        %v731 = vunpack.c.l.b16 %v721
        %v732 = vpack.c.b16 %v729, %v729
        %v733 = vpack.c.b16 %v730, %v730
        %v734 = vpack.c.b16 %v731, %v731
        %v736 = vsel %vm277, %v726, 0
        %v739 = vsel %vm281, %v732, 0
        %v742 = vsel %vm281, %v733, 0
        %v745 = vsel %vm281, %v734, 0
        %747 = vmatpush.bf16.msra.mxu0 0
        %748 = vmatpush.bf16.msra.mxu0 0
        %749 = vmatpush.bf16.msra.mxu0 0
        %750 = vmatpush.bf16.msra.mxu0 0
        %751 = vmatpush.bf16.msra.mxu0 0
        %752 = vmatpush.bf16.msra.mxu0 0
        %753 = vmatpush.bf16.msra.mxu0 0
        %754 = vmatpush.bf16.msra.mxu0 %v739
        %755 = vmatmul.bf16.gmra.mxu0 %v736
        %v756 = vpop.f32.mrf.mxu0
        %v757 = vadd.f32 0.0, %v756
        %v758 = vpop.f32.mrf.mxu0
        %v759 = vadd.f32 0.0, %v758
        %760 = vdwg.mxu0
        %761 = vmatpush.bf16.msra.mxu0 0
        %762 = vmatpush.bf16.msra.mxu0 0
        %763 = vmatpush.bf16.msra.mxu0 0
        %764 = vmatpush.bf16.msra.mxu0 0
        %765 = vmatpush.bf16.msra.mxu0 0
        %766 = vmatpush.bf16.msra.mxu0 0
        %767 = vmatpush.bf16.msra.mxu0 0
        %768 = vmatpush.bf16.msra.mxu0 %v742
        %769 = vmatmul.bf16.gmra.mxu0 %v736
        %v770 = vpop.f32.mrf.mxu0
        %v771 = vadd.f32 0.0, %v770
        %v772 = vpop.f32.mrf.mxu0
        %v773 = vadd.f32 0.0, %v772
        %774 = vdwg.mxu0
        %775 = vmatpush.bf16.msra.mxu0 0
        %776 = vmatpush.bf16.msra.mxu0 0
        %777 = vmatpush.bf16.msra.mxu0 0
        %778 = vmatpush.bf16.msra.mxu0 0
        %779 = vmatpush.bf16.msra.mxu0 0
        %780 = vmatpush.bf16.msra.mxu0 0
        %781 = vmatpush.bf16.msra.mxu0 0
        %782 = vmatpush.bf16.msra.mxu0 %v745
        %783 = vmatmul.bf16.gmra.mxu0 %v736
        %v784 = vpop.f32.mrf.mxu0
        %v785 = vadd.f32 0.0, %v784
        %v786 = vpop.f32.mrf.mxu0
        %v787 = vadd.f32 0.0, %v786
        %788 = vdwg.mxu0
        %v789 = vadd.f32 %v707, %v757
        %v790 = vadd.f32 %v708, %v771
        %v791 = vadd.f32 %v709, %v785
        %v792 = vadd.f32 %v710, %v759
        %v793 = vadd.f32 %v711, %v773
        %v794 = vadd.f32 %v712, %v787
        %v795 = vld [vmem:[%s226 + $0x24] sm:$0xcc]
        %v796 = vld [vmem:[%s226 + $0x2c] sm:$0xc]
        %v798 = vunpack.c.l.b16 %v719
        %v799 = vpack.c.b16 %v798, %v798
        %v800 = vshrl.u32 %v726, 16
        %v802 = vshll.u32 %v726, 16
        %v804 = vrot.slane %v802, 1
        %v805 = vor.u32 %v800, %v804
        %v807 = vshll.u32 %v799, 16
        %v809 = vrot.slane %v807, 1
        %v810 = vsel %vm253, %v805, %v809
        %v813 = vunpack.c.l.b16 %v795
        %v814 = vunpack.c.h.b16 %v795
        %v815 = vunpack.c.l.b16 %v796
        %v816 = vpack.c.b16 %v813, %v813
        %v817 = vpack.c.b16 %v814, %v814
        %v818 = vpack.c.b16 %v815, %v815
        %v819 = vrot.slane %v816, 2
        %v820 = vrot.slane %v817, 2
        %v821 = vrot.slane %v818, 2
        %v823 = vsel %vm277, %v810, 0
        %v826 = vsel %vm281, %v819, 0
        %v829 = vsel %vm281, %v820, 0
        %v832 = vsel %vm281, %v821, 0
        %834 = vmatpush.bf16.msra.mxu0 0
        %835 = vmatpush.bf16.msra.mxu0 0
        %836 = vmatpush.bf16.msra.mxu0 0
        %837 = vmatpush.bf16.msra.mxu0 0
        %838 = vmatpush.bf16.msra.mxu0 0
        %839 = vmatpush.bf16.msra.mxu0 0
        %840 = vmatpush.bf16.msra.mxu0 0
        %841 = vmatpush.bf16.msra.mxu0 %v826
        %842 = vmatmul.bf16.gmra.mxu0 %v823
        %v843 = vpop.f32.mrf.mxu0
        %v844 = vadd.f32 0.0, %v843
        %v845 = vpop.f32.mrf.mxu0
        %v846 = vadd.f32 0.0, %v845
        %847 = vdwg.mxu0
        %848 = vmatpush.bf16.msra.mxu0 0
        %849 = vmatpush.bf16.msra.mxu0 0
        %850 = vmatpush.bf16.msra.mxu0 0
        %851 = vmatpush.bf16.msra.mxu0 0
        %852 = vmatpush.bf16.msra.mxu0 0
        %853 = vmatpush.bf16.msra.mxu0 0
        %854 = vmatpush.bf16.msra.mxu0 0
        %855 = vmatpush.bf16.msra.mxu0 %v829
        %856 = vmatmul.bf16.gmra.mxu0 %v823
        %v857 = vpop.f32.mrf.mxu0
        %v858 = vadd.f32 0.0, %v857
        %v859 = vpop.f32.mrf.mxu0
        %v860 = vadd.f32 0.0, %v859
        %861 = vdwg.mxu0
        %862 = vmatpush.bf16.msra.mxu0 0
        %863 = vmatpush.bf16.msra.mxu0 0
        %864 = vmatpush.bf16.msra.mxu0 0
        %865 = vmatpush.bf16.msra.mxu0 0
        %866 = vmatpush.bf16.msra.mxu0 0
        %867 = vmatpush.bf16.msra.mxu0 0
        %868 = vmatpush.bf16.msra.mxu0 0
        %869 = vmatpush.bf16.msra.mxu0 %v832
        %870 = vmatmul.bf16.gmra.mxu0 %v823
        %v871 = vpop.f32.mrf.mxu0
        %v872 = vadd.f32 0.0, %v871
        %v873 = vpop.f32.mrf.mxu0
        %v874 = vadd.f32 0.0, %v873
        %875 = vdwg.mxu0
        %v876 = vadd.f32 %v789, %v844
        %v877 = vadd.f32 %v790, %v858
        %v878 = vadd.f32 %v791, %v872
        %v879 = vadd.f32 %v792, %v846
        %v880 = vadd.f32 %v793, %v860
        %v881 = vadd.f32 %v794, %v874
        %v882 = vld [vmem:[%s226 + $0x30] sm:$0x33]
        %v883 = vld [vmem:[%s226 + $0x38] sm:$0x3]
        %v884 = vrot.slane %v726, 1
        %v885 = vrot.slane %v799, 1
        %v886 = vsel %vm396, %v884, %v885
        %v889 = vunpack.c.l.b16 %v882
        %v890 = vunpack.c.h.b16 %v882
        %v891 = vunpack.c.l.b16 %v883
        %v892 = vpack.c.b16 %v889, %v889
        %v893 = vpack.c.b16 %v890, %v890
        %v894 = vpack.c.b16 %v891, %v891
        %v896 = vsel %vm277, %v886, 0
        %v899 = vsel %vm281, %v892, 0
        %v902 = vsel %vm281, %v893, 0
        %v905 = vsel %vm281, %v894, 0
        %907 = vmatpush.bf16.msra.mxu0 0
        %908 = vmatpush.bf16.msra.mxu0 0
        %909 = vmatpush.bf16.msra.mxu0 0
        %910 = vmatpush.bf16.msra.mxu0 0
        %911 = vmatpush.bf16.msra.mxu0 0
        %912 = vmatpush.bf16.msra.mxu0 0
        %913 = vmatpush.bf16.msra.mxu0 0
        %914 = vmatpush.bf16.msra.mxu0 %v899
        %915 = vmatmul.bf16.gmra.mxu0 %v896
        %v916 = vpop.f32.mrf.mxu0
        %v917 = vadd.f32 0.0, %v916
        %v918 = vpop.f32.mrf.mxu0
        %v919 = vadd.f32 0.0, %v918
        %920 = vdwg.mxu0
        %921 = vmatpush.bf16.msra.mxu0 0
        %922 = vmatpush.bf16.msra.mxu0 0
        %923 = vmatpush.bf16.msra.mxu0 0
        %924 = vmatpush.bf16.msra.mxu0 0
        %925 = vmatpush.bf16.msra.mxu0 0
        %926 = vmatpush.bf16.msra.mxu0 0
        %927 = vmatpush.bf16.msra.mxu0 0
        %928 = vmatpush.bf16.msra.mxu0 %v902
        %929 = vmatmul.bf16.gmra.mxu0 %v896
        %v930 = vpop.f32.mrf.mxu0
        %v931 = vadd.f32 0.0, %v930
        %v932 = vpop.f32.mrf.mxu0
        %v933 = vadd.f32 0.0, %v932
        %934 = vdwg.mxu0
        %935 = vmatpush.bf16.msra.mxu0 0
        %936 = vmatpush.bf16.msra.mxu0 0
        %937 = vmatpush.bf16.msra.mxu0 0
        %938 = vmatpush.bf16.msra.mxu0 0
        %939 = vmatpush.bf16.msra.mxu0 0
        %940 = vmatpush.bf16.msra.mxu0 0
        %941 = vmatpush.bf16.msra.mxu0 0
        %942 = vmatpush.bf16.msra.mxu0 %v905
        %943 = vmatmul.bf16.gmra.mxu0 %v896
        %v944 = vpop.f32.mrf.mxu0
        %v945 = vadd.f32 0.0, %v944
        %v946 = vpop.f32.mrf.mxu0
        %v947 = vadd.f32 0.0, %v946
        %948 = vdwg.mxu0
        %v949 = vadd.f32 %v876, %v917
        %v950 = vadd.f32 %v877, %v931
        %v951 = vadd.f32 %v878, %v945
        %v952 = vadd.f32 %v879, %v919
        %v953 = vadd.f32 %v880, %v933
        %v954 = vadd.f32 %v881, %v947
        %v955 = vld [vmem:[%s231] sm:$0x7]
        %v957 = vperm.slane %v955, 0
        %v958 = vperm.slane %v955, 1
        %v959 = vperm.slane %v955, 2
        %v963 = vadd.f32 %v949, %v957
        %v964 = vadd.f32 %v950, %v958
        %v965 = vadd.f32 %v951, %v959
        %v966 = vadd.f32 %v952, %v957
        %v967 = vadd.f32 %v953, %v958
        %v968 = vadd.f32 %v954, %v959
        %969 = vst [vmem:[%s216] sm:$0xff] %v963
        %970 = vst [vmem:[%s216 + $0x8] sm:$0xff] %v964
        %vm971 = vcmask 523264
        %972 = vst.msk [vmem:[%s216 + $0x10] sm:$0xff] %vm971, %v965
        %973 = vst [vmem:[%s216 + $0x18] sm:$0xff] %v966
        %974 = vst [vmem:[%s216 + $0x20] sm:$0xff] %v967
        %975 = vst.msk [vmem:[%s216 + $0x28] sm:$0xff] %vm971, %v968
        %s976 = sand.u32 %s126, 1
        %s977 = scalar_lea.sflag [#allocation3], %s976
        %s978 = sand.u32 %s126, 1
        %s979 = smul.addr %s978, 48
        %s980 = scalar_lea.vmem [#allocation2], %s979
        // Predicated region
        $region33: #{plain_conv.1} parent=31 // pred_check
          %p981 = pneg %p136
        $region34: #{plain_conv.1} parent=31 // pred_check_branch
          %983 = sbr.rel (%p981) target = $region36
        $region35: #{plain_conv.1} parent=31 // pred_region
          %s984 = smul.u32 3, %s23
          %986 = vsyncadd %s977, 0
          %s987 = smul.addr %s24, 6
          %s988 = sadd.s32 %s984, %s987
          %s989 = smul.addr %s22, 96
          %s990 = sadd.s32 %s988, %s989
          %s991 = smul.addr %s990, 8
          %s992 = scalar_lea.hbm %s3, %s991
          %s993 = sshll.u32 %s980, 4
          %s994 = int_to_ptr.vmem [resolvable:$true] %s993
          %s995 = sshll.u32 %s992, 4
          %s996 = int_to_ptr.hbm [resolvable:$true] %s995
          %1001 = dma.vmem_to_hbm [thread:$0]  %s994, 768, %s996, %s977, 384, 384, 24
        $region36: #{plain_conv.1} parent=31 // pred_fallthru
          _
      $region32: #{plain_conv.1} parent=5 // pred_fallthru
        _
      %p1002 = scmp.le.s32.totalorder 2, %s12
      // Predicated region
      $region37: #{plain_conv.1} parent=5 // pred_check
        %p1003 = pneg %p1002
      $region38: #{plain_conv.1} parent=5 // pred_check_branch
        %1005 = sbr.rel (%p1003) target = $region40
      $region39: #{plain_conv.1} parent=5 // pred_region
        %s1006 = ssub.s32 %s12, 2
        // Predicated region
        $region41: #{plain_conv.1} parent=39 // pred_check
          %p1007 = pneg %p142
        $region42: #{plain_conv.1} parent=39 // pred_check_branch
          %1009 = sbr.rel (%p1007) target = $region44
        $region43: #{plain_conv.1} parent=39 // pred_region
          %s1010 = sand.u32 %s127, 1
          %s1011 = scalar_lea.sflag [#allocation3], %s1010
          %s1012 = sand.u32 %s127, 1
          %s1013 = smul.addr %s1012, 48
          %s1014 = scalar_lea.vmem [#allocation2], %s1013
          %1016 = dma.done %s1011, 768
        $region44: #{plain_conv.1} parent=39 // pred_fallthru
          _
      $region40: #{plain_conv.1} parent=5 // pred_fallthru
        _
    $region6: #{plain_conv.1} parent=1 // loop_footer
      %s16 = sadd.s32 1, %s12
    $region7: #{plain_conv.1} parent=1 // loop_footer_branch
      %11 = sbr.rel target = $region3
    $region8: #{plain_conv.1} parent=1 // loop_exit
      _
    %1017 = vsyncpa [#allocation3], 1
    %s1018 = scalar_lea.sflag [#allocation3], 1
    %1019 = vsyncpa %s1018, 1

</llo_original>
